<compile_context>
chip_gen: v5e
topology: v5e:2x2
jax: 0.10.0
libtpu: 0.0.40
codegen_flags: <defaults>
</compile_context>

<pallas_src>
import functools

import jax
import jax.numpy as jnp
from jax.experimental import pallas as pl
from jax.experimental.pallas import tpu as pltpu

_MiB = 1024 * 1024


# ---------------------------------------------------------------------------
# Kernel bodies
# ---------------------------------------------------------------------------

def _gate_from_pooled(x_se, w1_ref, b1_ref, w2_ref, b2_ref):
    """(TB, C) f32 pooled activations -> (TB, C) f32 sigmoid gate."""
    r = jnp.dot(x_se, w1_ref[...].astype(jnp.float32),
                preferred_element_type=jnp.float32)
    r = r + b1_ref[...].astype(jnp.float32)              # (TB, R)
    r = r * jax.nn.sigmoid(r)                            # SiLU
    e = jnp.dot(r, w2_ref[...].astype(jnp.float32),
                preferred_element_type=jnp.float32)
    e = e + b2_ref[...].astype(jnp.float32)              # (TB, C)
    return jax.nn.sigmoid(e)


def _se_fused_kernel(x_ref, w1_ref, b1_ref, w2_ref, b2_ref, o_ref, *,
                     channels_last):
    # x_ref/o_ref: (TB, C, L) for NCL, (TB, L, C) for channels-last.
    x = x_ref[...]
    spatial_axis = 1 if channels_last else 2
    inv_l = 1.0 / x.shape[spatial_axis]
    # Exact f32 sum for the squeeze (kernel is HBM-bound; reduction hides
    # behind the DMA).
    x_se = jnp.sum(x, axis=spatial_axis, dtype=jnp.float32) * inv_l   # (TB, C)
    gate = _gate_from_pooled(x_se, w1_ref, b1_ref, w2_ref, b2_ref)
    gate = gate.astype(x.dtype)
    if channels_last:
        o_ref[...] = (x * gate[:, None, :]).astype(o_ref.dtype)
    else:
        o_ref[...] = (x * gate[:, :, None]).astype(o_ref.dtype)


def _se_gate_kernel(x_ref, w1_ref, b1_ref, w2_ref, b2_ref, gate_ref, acc_ref,
                    *, channels_last, inv_l):
    # Phase 1 of the two-phase path: accumulate the L-tiled sum, then compute
    # the (TB, 1, C) gate on the last L step.
    li = pl.program_id(1)

    @pl.when(li == 0)
    def _():
        acc_ref[...] = jnp.zeros_like(acc_ref)

    spatial_axis = 1 if channels_last else 2
    acc_ref[...] += jnp.sum(x_ref[...], axis=spatial_axis, dtype=jnp.float32)

    @pl.when(li == pl.num_programs(1) - 1)
    def _():
        x_se = acc_ref[...] * inv_l                       # true-L mean
        g = _gate_from_pooled(x_se, w1_ref, b1_ref, w2_ref, b2_ref)
        gate_ref[...] = g[:, None, :].astype(gate_ref.dtype)


def _se_apply_kernel(x_ref, gate_ref, o_ref, *, channels_last):
    # Phase 2 of the two-phase path: out = x * gate, tiled over (B, L).
    x = x_ref[...]
    g = gate_ref[...].astype(x.dtype)                     # (TB, 1, C)
    if channels_last:
        o_ref[...] = (x * g).astype(o_ref.dtype)
    else:
        o_ref[...] = (x * g[:, 0, :][:, :, None]).astype(o_ref.dtype)


# ---------------------------------------------------------------------------
# Tile sizing / VMEM budgeting
# ---------------------------------------------------------------------------

def _default_vmem_limit_bytes():
    """Generation-aware scoped-VMEM limit."""
    cap = None
    try:
        cap = getattr(pltpu.get_tpu_info(), "vmem_capacity_bytes", None)
    except Exception:
        cap = None
    if not cap:
        cap = 64 * _MiB                       # conservative (v7x-sized) default
    if cap >= 96 * _MiB:                      # v5e / v6e: 128 MiB physical
        return int(min(96 * _MiB, (cap * 3) // 4))
    return int(min(44 * _MiB, (cap * 7) // 10))   # v7x: 64 MiB physical


def _padded_bytes(rows, cols, itemsize):
    """Approximate VMEM footprint of a pinned (rows, cols) array ((8,128) tiles)."""
    return (-(-rows // 8) * 8) * (-(-cols // 128) * 128) * itemsize


def _slab_budget(vmem_limit_bytes, resident_weight_bytes):
    """Bytes available for the 4 pipelined activation slabs (2 in + 2 out)."""
    usable = vmem_limit_bytes - resident_weight_bytes - 1 * _MiB   # compiler scratch
    return max(int(usable * 0.9), 0)


def _pick_batch_tile(B, cap):
    """Largest divisor of B that is <= cap, preferring an even grid of >= 4
    steps (v7x's two TensorCores share the parallel grid), then >= 2."""
    cap = max(1, min(cap, B))
    divs = [d for d in range(1, cap + 1) if B % d == 0]
    for pred in (lambda d: (B // d) >= 4 and (B // d) % 2 == 0,
                 lambda d: (B // d) >= 2 and (B // d) % 2 == 0,
                 lambda d: True):
        cands = [d for d in divs if pred(d)]
        if cands:
            return max(cands)
    return 1


# ---------------------------------------------------------------------------
# Wrapper
# ---------------------------------------------------------------------------

def squeeze_excite(x, w1, b1, w2, b2, *, channels_last=False,
                   block_b=None, block_l=None,
                   vmem_limit_bytes=None, force_two_phase=False):
    """SqueezeExcite forward.

    x : (B, C, L) activations (NCL, as nn.Conv1d expects), or (B, L, C) when
        channels_last=True (lane-dense layout, recommended when L % 128 != 0).
    w1: (R, C) or (R, C, 1)    conv_reduce weight
    b1: (R,)                   conv_reduce bias
    w2: (C, R) or (C, R, 1)    conv_expand weight
    b2: (C,)                   conv_expand bias
    """
    if w1.ndim == 3:
        w1 = w1[..., 0]
    if w2.ndim == 3:
        w2 = w2[..., 0]
    if channels_last:
        B, L, C = x.shape
    else:
        B, C, L = x.shape
    R = w1.shape[0]

    # Trace-time weight prep: transpose once so the kernel runs plain
    # (TB,C)@(C,R) and (TB,R)@(R,C) matmuls with no in-kernel relayout.
    w1_t = jnp.transpose(w1)            # (C, R)
    w2_t = jnp.transpose(w2)            # (R, C)
    b1_2d = b1.reshape(1, R)
    b2_2d = b2.reshape(1, C)

    if vmem_limit_bytes is None:
        vmem_limit_bytes = _default_vmem_limit_bytes()
    vmem_limit_bytes = int(vmem_limit_bytes)

    w_itemsize = jnp.dtype(w1.dtype).itemsize
    resident_w = (_padded_bytes(C, R, w_itemsize) +
                  _padded_bytes(R, C, w_itemsize) +
                  _padded_bytes(1, R, w_itemsize) +
                  _padded_bytes(1, C, w_itemsize))
    budget = _slab_budget(vmem_limit_bytes, resident_w)

    itemsize = jnp.dtype(x.dtype).itemsize
    slab = C * L * itemsize                                  # one (C, L) map
    fused_cap = budget // (4 * slab) if slab else 0
    use_fused = (not force_two_phase) and fused_cap >= 1

    # ------------------------------------------------------------------ fused
    if use_fused:
        tb = block_b if block_b is not None else _pick_batch_tile(B, fused_cap)
        if B % tb != 0:
            raise ValueError(f"batch tile {tb} must divide batch {B}")
        x_block = (tb, L, C) if channels_last else (tb, C, L)

        def pinned(shape):
            # Constant index_map -> fetched once; single buffer returns VMEM
            # to the activation-slab budget.
            return pl.BlockSpec(shape, lambda i: (0, 0),
                                pipeline_mode=pl.Buffered(1))

        return pl.pallas_call(
            functools.partial(_se_fused_kernel, channels_last=channels_last),
            out_shape=jax.ShapeDtypeStruct(x.shape, x.dtype),
            grid_spec=pltpu.PrefetchScalarGridSpec(
                num_scalar_prefetch=0,
                grid=(B // tb,),
                in_specs=[
                    pl.BlockSpec(x_block, lambda i: (i, 0, 0)),
                    pinned((C, R)), pinned((1, R)),
                    pinned((R, C)), pinned((1, C)),
                ],
                out_specs=pl.BlockSpec(x_block, lambda i: (i, 0, 0)),
            ),
            compiler_params=pltpu.CompilerParams(
                dimension_semantics=("parallel",),
                vmem_limit_bytes=vmem_limit_bytes,
            ),
        )(x, w1_t, b1_2d, w2_t, b2_2d)

    # -------------------------------------------- two-phase (sum-then-gate)
    # A single (C, L) slab (x4 pipeline buffers) does not fit the VMEM budget
    # (v7x's 64 MiB hits this first), so tile L as well: pass 1 reduces +
    # computes the gate, pass 2 applies it. x is read twice, written once.
    lane_mult = 8 if channels_last else 128   # L-block legality per layout
    per_l = C * itemsize

    if block_l is not None:
        tl = int(block_l)
    else:
        tl_cap = max(1, budget // (4 * per_l))
        if L <= tl_cap:
            tl = L
        else:
            tl = 0
            cand = (tl_cap // lane_mult) * lane_mult
            while cand >= lane_mult:
                if L % cand == 0:
                    tl = cand
                    break
                cand -= lane_mult
            if tl == 0:
                raise ValueError(
                    f"SqueezeExcite: cannot tile L={L} into multiples of "
                    f"{lane_mult} that fit the VMEM budget ({budget} bytes); "
                    f"pad L or raise vmem_limit_bytes.")
    if L % tl != 0 or not (tl == L or tl % lane_mult == 0):
        raise ValueError(f"L tile {tl} is not a valid tile for L={L}")

    tb_cap = max(1, budget // (4 * per_l * tl))
    tb = block_b if block_b is not None else _pick_batch_tile(B, tb_cap)
    if B % tb != 0:
        raise ValueError(f"batch tile {tb} must divide batch {B}")

    grid = (B // tb, L // tl)
    if channels_last:
        x_block = (tb, tl, C)
        x_map = lambda i, l: (i, l, 0)
    else:
        x_block = (tb, C, tl)
        x_map = lambda i, l: (i, 0, l)
    gate_block = (tb, 1, C)
    gate_map = lambda i, l: (i, 0, 0)

    def pinned2(shape):
        return pl.BlockSpec(shape, lambda i, l: (0, 0),
                            pipeline_mode=pl.Buffered(1))

    gate = pl.pallas_call(
        functools.partial(_se_gate_kernel, channels_last=channels_last,
                          inv_l=1.0 / L),
        out_shape=jax.ShapeDtypeStruct((B, 1, C), jnp.float32),
        grid_spec=pltpu.PrefetchScalarGridSpec(
            num_scalar_prefetch=0,
            grid=grid,
            in_specs=[
                pl.BlockSpec(x_block, x_map),
                pinned2((C, R)), pinned2((1, R)),
                pinned2((R, C)), pinned2((1, C)),
            ],
            out_specs=pl.BlockSpec(gate_block, gate_map),
            scratch_shapes=[pltpu.VMEM((tb, C), jnp.float32)],
        ),
        compiler_params=pltpu.CompilerParams(
            dimension_semantics=("parallel", "arbitrary"),
            vmem_limit_bytes=vmem_limit_bytes,
        ),
    )(x, w1_t, b1_2d, w2_t, b2_2d)

    return pl.pallas_call(
        functools.partial(_se_apply_kernel, channels_last=channels_last),
        out_shape=jax.ShapeDtypeStruct(x.shape, x.dtype),
        grid_spec=pltpu.PrefetchScalarGridSpec(
            num_scalar_prefetch=0,
            grid=grid,
            in_specs=[
                pl.BlockSpec(x_block, x_map),
                pl.BlockSpec(gate_block, gate_map),
            ],
            out_specs=pl.BlockSpec(x_block, x_map),
        ),
        compiler_params=pltpu.CompilerParams(
            dimension_semantics=("parallel", "parallel"),
            vmem_limit_bytes=vmem_limit_bytes,
        ),
    )(x, gate)


# ---------------------------------------------------------------------------
# Reference + tests
# ---------------------------------------------------------------------------

def _reference(x, w1, b1, w2, b2, channels_last=False):
    if channels_last:
        x_se = jnp.mean(x, axis=1, keepdims=True)                  # (B,1,C)
        r = jnp.einsum('blc,rc->blr', x_se, w1) + b1[None, None, :]
        r = r * jax.nn.sigmoid(r)
        e = jnp.einsum('blr,cr->blc', r, w2) + b2[None, None, :]
        return x * jax.nn.sigmoid(e)
    x_se = jnp.mean(x, axis=2, keepdims=True)                      # (B,C,1)
    r = jnp.einsum('bcl,rc->brl', x_se, w1) + b1[None, :, None]
    r = r * jax.nn.sigmoid(r)
    e = jnp.einsum('brl,cr->bcl', r, w2) + b2[None, :, None]
    return x * jax.nn.sigmoid(e)


def _run_case(key, B, C, L, R, channels_last=False, **kwargs):
    kx, kw1, kb1, kw2, kb2 = jax.random.split(key, 5)
    x_shape = (B, L, C) if channels_last else (B, C, L)
    x = jax.random.normal(kx, x_shape, dtype=jnp.float32)
    # Conv1d(C, R, 1) weight is (R, C, 1); we keep the squeezed (R, C) form.
    w1 = jax.random.normal(kw1, (R, C), dtype=jnp.float32) * 0.5
    b1 = jax.random.normal(kb1, (R,), dtype=jnp.float32) * 0.1
    w2 = jax.random.normal(kw2, (C, R), dtype=jnp.float32) * 0.5
    b2 = jax.random.normal(kb2, (C,), dtype=jnp.float32) * 0.1

    out = jax.block_until_ready(
        squeeze_excite(x, w1, b1, w2, b2, channels_last=channels_last,
                       **kwargs))
    ref = _reference(x, w1, b1, w2, b2, channels_last=channels_last)
    assert out.shape == x_shape
    assert jnp.allclose(out, ref, atol=1e-5, rtol=1e-5), (
        f"mismatch vs reference for shape {x_shape}")


if __name__ == "__main__":
    key = jax.random.PRNGKey(0)
    k1, k2, k3, k4 = jax.random.split(key, 4)

    # 1. Small shape matching the module defaults (NCL, fused path).
    _run_case(k1, B=2, C=4, L=16, R=2)
    # 2. Lane-dense L, batch-tiled fused grid (grid of 4).
    _run_case(k2, B=16, C=8, L=128, R=4)
    # 3. Channels-last activations: C on the lane dim (lane-dense stores).
    _run_case(k3, B=4, C=128, L=32, R=32, channels_last=True)
    # 4. Forced two-phase (sum-then-gate) path with an L-tiled grid.
    _run_case(k4, B=8, C=16, L=256, R=8, force_two_phase=True, block_l=128)

    print("KERNEL_OK")
</pallas_src>

<mosaic_0001>
module attributes {stable_mosaic.version = 11 : i64} {
  func.func @_se_fused_kernel(%arg0: i32, %arg1: memref<1x4x16xf32, #tpu.memory_space<vmem>>, %arg2: memref<4x2xf32, #tpu.memory_space<vmem>>, %arg3: memref<1x2xf32, #tpu.memory_space<vmem>>, %arg4: memref<2x4xf32, #tpu.memory_space<vmem>>, %arg5: memref<1x4xf32, #tpu.memory_space<vmem>>, %arg6: memref<1x4x16xf32, #tpu.memory_space<vmem>>) attributes {dimension_semantics = [#tpu.dimension_semantics<parallel>], iteration_bounds = array<i64: 2>, scalar_prefetch = 0 : i64, scratch_operands = 0 : i64, tpu.core_type = #tpu.core_type<tc>, window_params = [{transform_indices = @transform_0, window_bounds = array<i64: 1, 4, 16>}, {pipeline_mode = #tpu.pipeline_mode<synchronous>, transform_indices = @transform_1, window_bounds = array<i64: 4, 2>}, {pipeline_mode = #tpu.pipeline_mode<synchronous>, transform_indices = @transform_2, window_bounds = array<i64: 1, 2>}, {pipeline_mode = #tpu.pipeline_mode<synchronous>, transform_indices = @transform_3, window_bounds = array<i64: 2, 4>}, {pipeline_mode = #tpu.pipeline_mode<synchronous>, transform_indices = @transform_4, window_bounds = array<i64: 1, 4>}, {transform_indices = @transform_5, window_bounds = array<i64: 1, 4, 16>}]} {
    %c0 = arith.constant 0 : index
    %c0_0 = arith.constant 0 : index
    %c0_1 = arith.constant 0 : index
    %0 = vector.load %arg1[%c0, %c0_0, %c0_1] : memref<1x4x16xf32, #tpu.memory_space<vmem>>, vector<1x4x16xf32>
    %cst = arith.constant dense<0.000000e+00> : vector<1x4xf32>
    %1 = vector.multi_reduction <add>, %0, %cst [2] : vector<1x4x16xf32> to vector<1x4xf32>
    %cst_2 = arith.constant 6.250000e-02 : f32
    %2 = vector.broadcast %cst_2 : f32 to vector<1x4xf32>
    %3 = arith.mulf %1, %2 : vector<1x4xf32>
    %c0_3 = arith.constant 0 : index
    %c0_4 = arith.constant 0 : index
    %4 = vector.load %arg2[%c0_3, %c0_4] : memref<4x2xf32, #tpu.memory_space<vmem>>, vector<4x2xf32>
    %cst_5 = arith.constant dense<0.000000e+00> : vector<1x2xf32>
    %5 = tpu.matmul %3, %4, %cst_5 {dimension_numbers = #tpu.dot_dimension_numbers<[1], [0], [0], [1], [0, 0, 1, 1], [], []>} : vector<1x4xf32>, vector<4x2xf32>, vector<1x2xf32> -> vector<1x2xf32>
    %c0_6 = arith.constant 0 : index
    %c0_7 = arith.constant 0 : index
    %6 = vector.load %arg3[%c0_6, %c0_7] : memref<1x2xf32, #tpu.memory_space<vmem>>, vector<1x2xf32>
    %7 = arith.addf %5, %6 : vector<1x2xf32>
    %8 = arith.negf %7 : vector<1x2xf32>
    %9 = math.exp %8 : vector<1x2xf32>
    %cst_8 = arith.constant 1.000000e+00 : f32
    %10 = vector.broadcast %cst_8 : f32 to vector<1x2xf32>
    %11 = arith.addf %10, %9 : vector<1x2xf32>
    %12 = arith.divf %10, %11 : vector<1x2xf32>
    %13 = arith.mulf %7, %12 : vector<1x2xf32>
    %c0_9 = arith.constant 0 : index
    %c0_10 = arith.constant 0 : index
    %14 = vector.load %arg4[%c0_9, %c0_10] : memref<2x4xf32, #tpu.memory_space<vmem>>, vector<2x4xf32>
    %cst_11 = arith.constant dense<0.000000e+00> : vector<1x4xf32>
    %15 = tpu.matmul %13, %14, %cst_11 {dimension_numbers = #tpu.dot_dimension_numbers<[1], [0], [0], [1], [0, 0, 1, 1], [], []>} : vector<1x2xf32>, vector<2x4xf32>, vector<1x4xf32> -> vector<1x4xf32>
    %c0_12 = arith.constant 0 : index
    %c0_13 = arith.constant 0 : index
    %16 = vector.load %arg5[%c0_12, %c0_13] : memref<1x4xf32, #tpu.memory_space<vmem>>, vector<1x4xf32>
    %17 = arith.addf %15, %16 : vector<1x4xf32>
    %18 = arith.negf %17 : vector<1x4xf32>
    %19 = math.exp %18 : vector<1x4xf32>
    %cst_14 = arith.constant 1.000000e+00 : f32
    %20 = vector.broadcast %cst_14 : f32 to vector<1x4xf32>
    %21 = arith.addf %20, %19 : vector<1x4xf32>
    %22 = arith.divf %20, %21 : vector<1x4xf32>
    %23 = vector.shape_cast %22 : vector<1x4xf32> to vector<1x4x1xf32>
    %24 = vector.broadcast %23 : vector<1x4x1xf32> to vector<1x4x16xf32>
    %25 = arith.mulf %0, %24 : vector<1x4x16xf32>
    %c0_15 = arith.constant 0 : index
    %c0_16 = arith.constant 0 : index
    %c0_17 = arith.constant 0 : index
    %26 = vector.load %arg6[%c0_15, %c0_16, %c0_17] : memref<1x4x16xf32, #tpu.memory_space<vmem>>, vector<1x4x16xf32>
    tpu.vector_store %arg6[%c0_15, %c0_16, %c0_17], %25 {strides = array<i32>} : memref<1x4x16xf32, #tpu.memory_space<vmem>>, vector<1x4x16xf32>,
    return
  }
  func.func @transform_0(%arg0: i32) -> (i32, i32, i32) {
    %c0_i32 = arith.constant 0 : i32
    %c0_i32_0 = arith.constant 0 : i32
    %c0_i32_1 = arith.constant 0 : i32
    return %arg0, %c0_i32, %c0_i32_0 : i32, i32, i32
  }
  func.func @transform_1(%arg0: i32) -> (i32, i32) {
    %c0_i32 = arith.constant 0 : i32
    %c0_i32_0 = arith.constant 0 : i32
    %c0_i32_1 = arith.constant 0 : i32
    return %c0_i32, %c0_i32_0 : i32, i32
  }
  func.func @transform_2(%arg0: i32) -> (i32, i32) {
    %c0_i32 = arith.constant 0 : i32
    %c0_i32_0 = arith.constant 0 : i32
    %c0_i32_1 = arith.constant 0 : i32
    return %c0_i32, %c0_i32_0 : i32, i32
  }
  func.func @transform_3(%arg0: i32) -> (i32, i32) {
    %c0_i32 = arith.constant 0 : i32
    %c0_i32_0 = arith.constant 0 : i32
    %c0_i32_1 = arith.constant 0 : i32
    return %c0_i32, %c0_i32_0 : i32, i32
  }
  func.func @transform_4(%arg0: i32) -> (i32, i32) {
    %c0_i32 = arith.constant 0 : i32
    %c0_i32_0 = arith.constant 0 : i32
    %c0_i32_1 = arith.constant 0 : i32
    return %c0_i32, %c0_i32_0 : i32, i32
  }
  func.func @transform_5(%arg0: i32) -> (i32, i32, i32) {
    %c0_i32 = arith.constant 0 : i32
    %c0_i32_0 = arith.constant 0 : i32
    %c0_i32_1 = arith.constant 0 : i32
    return %arg0, %c0_i32, %c0_i32_0 : i32, i32, i32
  }
}

</mosaic_0001>

<llo_original>
// kernel: tpu_custom_call.1
$region0: #{tpu_custom_call.1}
  #allocation0 [shape = 'u32[]', space=smem, size = 0x4, offset = 0x4, fixed_abs, tag = 'smem constant byte address 0x4 - core index']
  #allocation1 [shape = 'u32[72,128]{1,0:T(1,128)}', space=vmem, size = 0x9000, scoped, tag = 'internal scratch']
  %s0 = inlined_call_operand.hbm [shape: f32[2,4,16], index: 0, kind: input, shape index: {}]
  %s1 = inlined_call_operand.vmem [shape: f32[4,2], index: 1, kind: input, shape index: {}]
  %s2 = inlined_call_operand.vmem [shape: f32[1,2], index: 2, kind: input, shape index: {}]
  %s3 = inlined_call_operand.vmem [shape: f32[2,4], index: 3, kind: input, shape index: {}]
  %s4 = inlined_call_operand.vmem [shape: f32[1,4], index: 4, kind: input, shape index: {}]
  %s5 = inlined_call_operand.hbm [shape: f32[2,4,16], index: 5, kind: output, shape index: {}]
  %s6 = sld [smem:[#allocation0]]
  $region57: #{tpu_custom_call.1} parent=0
    _
  %s8 = ssub.s32 1, %s6
  %s9 = scalar_select 0, %s8, %s6
  $region1: #{tpu_custom_call.1} parent=0
    #allocation2 [shape = 'u8[4096]{0}', space=vmem, size = 0x1000, scoped, tag = 'input window, operand 0']
    #allocation3 [shape = 's32[2]{0}', space=sflag, size = 0x8, scoped, tag = 'scoped memory for tpu_custom_call.1']
    #allocation4 [shape = 's32[2]{0}', space=sflag, size = 0x8, scoped, tag = 'scoped memory for tpu_custom_call.1']
    #allocation5 [shape = 'u8[4096]{0}', space=vmem, size = 0x1000, scoped, tag = 'output window, operand 0']
    %10 = vsyncpa [#allocation3], 0
    %s11 = scalar_lea.sflag [#allocation3], 1
    %12 = vsyncpa %s11, 0
    %13 = vsyncpa [#allocation4], 0
    %s14 = scalar_lea.sflag [#allocation4], 1
    %15 = vsyncpa %s14, 0
    loop: start=0, step=1, limit=4
    $region2: #{tpu_custom_call.1} parent=1 // loop_pre_header
      _
    $region3: #{tpu_custom_call.1} parent=1 // loop_header
      %s17 = sphi 0, %s21
      %p18 = scmp.ge.s32.totalorder %s17, 4
      %s27 = sphi 0, %s29
      %s30 = sphi 0, %s27
      %s31 = sphi 0, %s30
      %s47 = sphi 0, %s31
      %s51 = sphi 0, %s51
      %s53 = sphi 0, %s51
      %s54 = sphi 0, %s53
      %s68 = sphi 0, %s54
      %s72 = sphi 0, %s72
      %s74 = sphi 0, %s72
      %s75 = sphi 0, %s74
      %s89 = sphi 0, %s75
      %s93 = sphi 0, %s93
      %s95 = sphi 0, %s93
      %s96 = sphi 0, %s95
      %s110 = sphi 0, %s96
      %s114 = sphi 0, %s114
      %s116 = sphi 0, %s114
      %s117 = sphi 0, %s116
      %s131 = sphi 0, %s117
      %s137 = sphi 0, %s139
      %s140 = sphi 0, %s137
      %s141 = sphi 0, %s140
      %s157 = sphi 0, %s141
    $region4: #{tpu_custom_call.1} parent=1 // loop_header_branch
      %20 = sbr.rel (%p18) target = $region8
    $region5: #{tpu_custom_call.1} parent=1 // loop_body
      %s22 = ssub.s32 %s17, 1
      %s23 = ssub.s32 %s17, 2
      %s24 = sadd.s32 %s17, 1
      %s25 = ssub.s32 %s17, %s24
      %p26 = scmp.eq.s32.totalorder %s25, 0
      %s28 = sadd.s32 %s27, 1
      %s29 = scalar_select %p26, %s27, %s28
      %p32 = pneg %p26
      %p33 = scmp.eq.s32.totalorder %s17, 1
      %p34 = por %p32, %p33
      %p35 = scmp.ne.s32.totalorder %s27, %s30
      %p36 = scmp.eq.s32.totalorder %s17, 0
      %p37 = por %p35, %p36
      %p38 = scmp.ne.s32.totalorder %s27, %s30
      %p39 = scmp.eq.s32.totalorder %s22, 1
      %p40 = por %p38, %p39
      %p41 = scmp.ne.s32.totalorder %s30, %s31
      %p42 = scmp.eq.s32.totalorder %s22, 0
      %p43 = por %p41, %p42
      %p44 = scmp.ne.s32.totalorder %s30, %s31
      %p45 = scmp.eq.s32.totalorder %s23, 1
      %p46 = por %p44, %p45
      %p48 = scmp.ne.s32.totalorder %s31, %s47
      %p49 = scmp.eq.s32.totalorder %s23, 0
      %p50 = por %p48, %p49
      %s52 = sadd.s32 %s51, 1
      %p55 = scmp.eq.s32.totalorder %s17, 1
      %p56 = scmp.ne.s32.totalorder %s51, %s53
      %p57 = scmp.eq.s32.totalorder %s17, 0
      %p58 = por %p56, %p57
      %p59 = scmp.ne.s32.totalorder %s51, %s53
      %p60 = scmp.eq.s32.totalorder %s22, 1
      %p61 = por %p59, %p60
      %p62 = scmp.ne.s32.totalorder %s53, %s54
      %p63 = scmp.eq.s32.totalorder %s22, 0
      %p64 = por %p62, %p63
      %p65 = scmp.ne.s32.totalorder %s53, %s54
      %p66 = scmp.eq.s32.totalorder %s23, 1
      %p67 = por %p65, %p66
      %p69 = scmp.ne.s32.totalorder %s54, %s68
      %p70 = scmp.eq.s32.totalorder %s23, 0
      %p71 = por %p69, %p70
      %s73 = sadd.s32 %s72, 1
      %p76 = scmp.eq.s32.totalorder %s17, 1
      %p77 = scmp.ne.s32.totalorder %s72, %s74
      %p78 = scmp.eq.s32.totalorder %s17, 0
      %p79 = por %p77, %p78
      %p80 = scmp.ne.s32.totalorder %s72, %s74
      %p81 = scmp.eq.s32.totalorder %s22, 1
      %p82 = por %p80, %p81
      %p83 = scmp.ne.s32.totalorder %s74, %s75
      %p84 = scmp.eq.s32.totalorder %s22, 0
      %p85 = por %p83, %p84
      %p86 = scmp.ne.s32.totalorder %s74, %s75
      %p87 = scmp.eq.s32.totalorder %s23, 1
      %p88 = por %p86, %p87
      %p90 = scmp.ne.s32.totalorder %s75, %s89
      %p91 = scmp.eq.s32.totalorder %s23, 0
      %p92 = por %p90, %p91
      %s94 = sadd.s32 %s93, 1
      %p97 = scmp.eq.s32.totalorder %s17, 1
      %p98 = scmp.ne.s32.totalorder %s93, %s95
      %p99 = scmp.eq.s32.totalorder %s17, 0
      %p100 = por %p98, %p99
      %p101 = scmp.ne.s32.totalorder %s93, %s95
      %p102 = scmp.eq.s32.totalorder %s22, 1
      %p103 = por %p101, %p102
      %p104 = scmp.ne.s32.totalorder %s95, %s96
      %p105 = scmp.eq.s32.totalorder %s22, 0
      %p106 = por %p104, %p105
      %p107 = scmp.ne.s32.totalorder %s95, %s96
      %p108 = scmp.eq.s32.totalorder %s23, 1
      %p109 = por %p107, %p108
      %p111 = scmp.ne.s32.totalorder %s96, %s110
      %p112 = scmp.eq.s32.totalorder %s23, 0
      %p113 = por %p111, %p112
      %s115 = sadd.s32 %s114, 1
      %p118 = scmp.eq.s32.totalorder %s17, 1
      %p119 = scmp.ne.s32.totalorder %s114, %s116
      %p120 = scmp.eq.s32.totalorder %s17, 0
      %p121 = por %p119, %p120
      %p122 = scmp.ne.s32.totalorder %s114, %s116
      %p123 = scmp.eq.s32.totalorder %s22, 1
      %p124 = por %p122, %p123
      %p125 = scmp.ne.s32.totalorder %s116, %s117
      %p126 = scmp.eq.s32.totalorder %s22, 0
      %p127 = por %p125, %p126
      %p128 = scmp.ne.s32.totalorder %s116, %s117
      %p129 = scmp.eq.s32.totalorder %s23, 1
      %p130 = por %p128, %p129
      %p132 = scmp.ne.s32.totalorder %s117, %s131
      %p133 = scmp.eq.s32.totalorder %s23, 0
      %p134 = por %p132, %p133
      %s135 = ssub.s32 %s17, %s24
      %p136 = scmp.eq.s32.totalorder %s135, 0
      %s138 = sadd.s32 %s137, 1
      %s139 = scalar_select %p136, %s137, %s138
      %p142 = pneg %p136
      %p143 = scmp.eq.s32.totalorder %s17, 1
      %p144 = por %p142, %p143
      %p145 = scmp.ne.s32.totalorder %s137, %s140
      %p146 = scmp.eq.s32.totalorder %s17, 0
      %p147 = por %p145, %p146
      %p148 = scmp.ne.s32.totalorder %s137, %s140
      %p149 = scmp.eq.s32.totalorder %s22, 1
      %p150 = por %p148, %p149
      %p151 = scmp.ne.s32.totalorder %s140, %s141
      %p152 = scmp.eq.s32.totalorder %s22, 0
      %p153 = por %p151, %p152
      %p154 = scmp.ne.s32.totalorder %s140, %s141
      %p155 = scmp.eq.s32.totalorder %s23, 1
      %p156 = por %p154, %p155
      %p158 = scmp.ne.s32.totalorder %s141, %s157
      %p159 = scmp.eq.s32.totalorder %s23, 0
      %p160 = por %p158, %p159
      %p161 = scmp.le.s32.totalorder 1, %s17
      %p162 = scmp.lt.s32.totalorder %s17, 3
      %p163 = pnand %p161, %p162
      %p164 = pneg %p163
      // Predicated region
      $region9: #{tpu_custom_call.1} parent=5 // pred_check
        _
      $region10: #{tpu_custom_call.1} parent=5 // pred_check_branch
        %166 = sbr.rel (%p163) target = $region12
      $region11: #{tpu_custom_call.1} parent=5 // pred_region
        %s167 = ssub.s32 %s17, 1
        // Predicated region
        $region13: #{tpu_custom_call.1} parent=11 // pred_check
          %p168 = pneg %p64
        $region14: #{tpu_custom_call.1} parent=11 // pred_check_branch
          %170 = sbr.rel (%p168) target = $region16
        $region15: #{tpu_custom_call.1} parent=11 // pred_region
          _
        $region16: #{tpu_custom_call.1} parent=11 // pred_fallthru
          _
        // Predicated region
        $region17: #{tpu_custom_call.1} parent=11 // pred_check
          %p171 = pneg %p85
        $region18: #{tpu_custom_call.1} parent=11 // pred_check_branch
          %173 = sbr.rel (%p171) target = $region20
        $region19: #{tpu_custom_call.1} parent=11 // pred_region
          _
        $region20: #{tpu_custom_call.1} parent=11 // pred_fallthru
          _
        // Predicated region
        $region21: #{tpu_custom_call.1} parent=11 // pred_check
          %p174 = pneg %p106
        $region22: #{tpu_custom_call.1} parent=11 // pred_check_branch
          %176 = sbr.rel (%p174) target = $region24
        $region23: #{tpu_custom_call.1} parent=11 // pred_region
          _
        $region24: #{tpu_custom_call.1} parent=11 // pred_fallthru
          _
        // Predicated region
        $region25: #{tpu_custom_call.1} parent=11 // pred_check
          %p177 = pneg %p127
        $region26: #{tpu_custom_call.1} parent=11 // pred_check_branch
          %179 = sbr.rel (%p177) target = $region28
        $region27: #{tpu_custom_call.1} parent=11 // pred_region
          _
        $region28: #{tpu_custom_call.1} parent=11 // pred_fallthru
          _
      $region12: #{tpu_custom_call.1} parent=5 // pred_fallthru
        _
      %p180 = scmp.lt.s32.totalorder %s17, 2
      // Predicated region
      $region29: #{tpu_custom_call.1} parent=5 // pred_check
        %p181 = pneg %p180
      $region30: #{tpu_custom_call.1} parent=5 // pred_check_branch
        %183 = sbr.rel (%p181) target = $region32
      $region31: #{tpu_custom_call.1} parent=5 // pred_region
        // Predicated region
        $region33: #{tpu_custom_call.1} parent=31 // pred_check
          %p184 = pneg %p37
        $region34: #{tpu_custom_call.1} parent=31 // pred_check_branch
          %186 = sbr.rel (%p184) target = $region36
        $region35: #{tpu_custom_call.1} parent=31 // pred_region
          %s187 = sand.u32 %s27, 1
          %s188 = scalar_lea.sflag [#allocation3], %s187
          %s189 = sand.u32 %s27, 1
          %s190 = smul.addr %s189, 4
          %s191 = scalar_lea.vmem [#allocation2], %s190
          %193 = vsyncadd %s188, 0
          %s194 = smul.addr %s17, 4
          %s195 = scalar_lea.hbm %s0, %s194
          %s197 = sshll.u32 %s195, 4
          %s198 = int_to_ptr.hbm [resolvable:$true] %s197
          %s199 = sshll.u32 %s191, 4
          %s200 = int_to_ptr.vmem [resolvable:$true] %s199
          %202 = dma.hbm_to_vmem [thread:$0]  %s198, 64, %s200, %s188
        $region36: #{tpu_custom_call.1} parent=31 // pred_fallthru
          _
      $region32: #{tpu_custom_call.1} parent=5 // pred_fallthru
        _
      %p203 = scmp.le.s32.totalorder 1, %s17
      %p204 = scmp.lt.s32.totalorder %s17, 3
      %p205 = pnand %p203, %p204
      %p206 = pneg %p205
      // Predicated region
      $region37: #{tpu_custom_call.1} parent=5 // pred_check
        _
      $region38: #{tpu_custom_call.1} parent=5 // pred_check_branch
        %208 = sbr.rel (%p205) target = $region40
      $region39: #{tpu_custom_call.1} parent=5 // pred_region
        %s209 = ssub.s32 %s17, 1
        %s210 = sand.u32 %s30, 1
        %s211 = scalar_lea.sflag [#allocation3], %s210
        %s212 = sand.u32 %s30, 1
        %s213 = smul.addr %s212, 4
        %s214 = scalar_lea.vmem [#allocation2], %s213
        // Predicated region
        $region41: #{tpu_custom_call.1} parent=39 // pred_check
          %p215 = pneg %p43
        $region42: #{tpu_custom_call.1} parent=39 // pred_check_branch
          %217 = sbr.rel (%p215) target = $region44
        $region43: #{tpu_custom_call.1} parent=39 // pred_region
          %219 = dma.done %s211, 64
        $region44: #{tpu_custom_call.1} parent=39 // pred_fallthru
          _
        %s220 = sand.u32 %s30, 1
        %s221 = scalar_lea.sflag [#allocation3], %s220
        %s222 = sand.u32 %s30, 1
        %s223 = smul.addr %s222, 4
        %s224 = scalar_lea.vmem [#allocation2], %s223
        %p225 = pneg %p43
        %p226 = pneg %p40
        %p227 = pneg %p64
        %p228 = pneg %p61
        %p229 = pneg %p85
        %p230 = pneg %p82
        %p231 = pneg %p106
        %p232 = pneg %p103
        %p233 = pneg %p127
        %p234 = pneg %p124
        %p235 = pneg %p153
        %p236 = pneg %p150
        %s237 = sand.u32 %s140, 1
        %s238 = scalar_lea.sflag [#allocation4], %s237
        %s239 = sand.u32 %s140, 1
        %s240 = smul.addr %s239, 4
        %s241 = scalar_lea.vmem [#allocation5], %s240
        %v242 = vld [vmem:[%s214] sm:$0xf]
        %vm243 = vcmask 125952
        %v244 = vsel %vm243, %v242, 0.0
        %245 = vadd.xlane.f32.xlu0 %v244
        %v246 = vpop.xlane.xlu0 %245
        %v247 = vmul.f32 %v246, 0.0625
        %v248 = vld [vmem:[%s1] sm:$0xf]
        %v249 = vld [vmem:[%s2] sm:$0x1]
        %v251 = vlaneseq
        %v252 = vand.u32 %v251, 127
        %v253 = vperm.slane %v247, %v252
        %vm254 = vcmask 31744
        %v255 = vsel %vm254, %v253, 0
        %vm257 = vcmask 1043456
        %v259 = vsel %vm257, %v248, 0
        %261 = vmatpush.msra.mxu0 0.0
        %262 = vmatpush.msra.mxu0 0.0
        %263 = vmatpush.msra.mxu0 0.0
        %264 = vmatpush.msra.mxu0 0.0
        %265 = vmatpush.msra.mxu0 0.0
        %266 = vmatpush.msra.mxu0 0.0
        %267 = vmatpush.msra.mxu0 0.0
        %268 = vmatpush.msra.mxu0 0.0
        %269 = vmatpush.msra.mxu0 0.0
        %270 = vmatpush.msra.mxu0 0.0
        %271 = vmatpush.msra.mxu0 0.0
        %272 = vmatpush.msra.mxu0 0.0
        %273 = vmatpush.msra.mxu0 0.0
        %274 = vmatpush.msra.mxu0 0.0
        %275 = vmatpush.msra.mxu0 0.0
        %276 = vmatpush.msra.mxu0 %v259
        %277 = vmatmul.f32.gmra.mxu0 %v255
        %v278 = vpop.f32.mrf.mxu0
        %v279 = vadd.f32 %v249, %v278
        %280 = vdwg.mxu0
        %v281 = vxor.u32 %v279, 2147483648
        %v282 = vmul.f32 %v281, 1.442695
        %v283 = vpow.pop %v282
        %v284 = vadd.f32 %v283, 1.0
        %v285 = vrcp.pop %v284
        %v286 = vmul.f32 %v284, %v285
        %v287 = vsub.f32 1.0, %v286
        %v288 = vmul.f32 %v285, %v287
        %v289 = vadd.f32 %v285, %v288
        %vm290 = vweird.f32 %v284
        %vm291 = vweird.f32 %v285
        %vm292 = vmor %vm290, %vm291
        %v293 = vsel %vm292, %v285, %v289
        %v294 = vand.u32 2147483647, %v284
        %vm295 = vcmp.eq.f32.partialorder %v294, 8.507059e+37
        %v296 = vand.u32 %v284, 2147483648
        %v297 = vor.u32 1.1754944e-38, %v296
        %v298 = vsel %vm295, %v297, %v293
        %v299 = vmul.f32 1.0, %v298
        %v300 = vmul.f32 %v279, %v299
        %v301 = vld [vmem:[%s3] sm:$0x3]
        %v302 = vld [vmem:[%s4] sm:$0x1]
        %vm303 = vcmask 15360
        %v305 = vsel %vm303, %v300, 0
        %vm307 = vcmask 1041408
        %v309 = vsel %vm307, %v301, 0
        %311 = vmatpush.msra.mxu0 0.0
        %312 = vmatpush.msra.mxu0 0.0
        %313 = vmatpush.msra.mxu0 0.0
        %314 = vmatpush.msra.mxu0 0.0
        %315 = vmatpush.msra.mxu0 0.0
        %316 = vmatpush.msra.mxu0 0.0
        %317 = vmatpush.msra.mxu0 0.0
        %318 = vmatpush.msra.mxu0 0.0
        %319 = vmatpush.msra.mxu0 0.0
        %320 = vmatpush.msra.mxu0 0.0
        %321 = vmatpush.msra.mxu0 0.0
        %322 = vmatpush.msra.mxu0 0.0
        %323 = vmatpush.msra.mxu0 0.0
        %324 = vmatpush.msra.mxu0 0.0
        %325 = vmatpush.msra.mxu0 0.0
        %326 = vmatpush.msra.mxu0 %v309
        %327 = vmatmul.f32.gmra.mxu0 %v305
        %v328 = vpop.f32.mrf.mxu0
        %v329 = vadd.f32 %v302, %v328
        %330 = vdwg.mxu0
        %v331 = vxor.u32 %v329, 2147483648
        %v332 = vmul.f32 %v331, 1.442695
        %v333 = vpow.pop %v332
        %v334 = vadd.f32 %v333, 1.0
        %v335 = vrcp.pop %v334
        %v336 = vmul.f32 %v334, %v335
        %v337 = vsub.f32 1.0, %v336
        %v338 = vmul.f32 %v335, %v337
        %v339 = vadd.f32 %v335, %v338
        %vm340 = vweird.f32 %v334
        %vm341 = vweird.f32 %v335
        %vm342 = vmor %vm340, %vm341
        %v343 = vsel %vm342, %v335, %v339
        %v344 = vand.u32 2147483647, %v334
        %vm345 = vcmp.eq.f32.partialorder %v344, 8.507059e+37
        %v346 = vand.u32 %v334, 2147483648
        %v347 = vor.u32 1.1754944e-38, %v346
        %v348 = vsel %vm345, %v347, %v343
        %v349 = vmul.f32 1.0, %v348
        %v350 = vperm.slane %v349, 0
        %v351 = vlaneseq
        %v352 = vshrl.u32 %v351, 7
        %354 = vset.pattern.permute.xlu0 %v352
        %355 = vperm.xlu0 %354, %v350
        %v356 = vpop.permute.xlu0 %355
        %v357 = vmul.f32 %v242, %v356
        %358 = vst.msk [vmem:[%s241] sm:$0xf] %vm243, %v357
        %s359 = sand.u32 %s140, 1
        %s360 = scalar_lea.sflag [#allocation4], %s359
        %s361 = sand.u32 %s140, 1
        %s362 = smul.addr %s361, 4
        %s363 = scalar_lea.vmem [#allocation5], %s362
        // Predicated region
        $region45: #{tpu_custom_call.1} parent=39 // pred_check
          %p364 = pneg %p150
        $region46: #{tpu_custom_call.1} parent=39 // pred_check_branch
          %366 = sbr.rel (%p364) target = $region48
        $region47: #{tpu_custom_call.1} parent=39 // pred_region
          %368 = vsyncadd %s360, 0
          %s369 = smul.addr %s22, 4
          %s370 = scalar_lea.hbm %s5, %s369
          %s372 = sshll.u32 %s363, 4
          %s373 = int_to_ptr.vmem [resolvable:$true] %s372
          %s374 = sshll.u32 %s370, 4
          %s375 = int_to_ptr.hbm [resolvable:$true] %s374
          %377 = dma.vmem_to_hbm [thread:$0]  %s373, 64, %s375, %s360
        $region48: #{tpu_custom_call.1} parent=39 // pred_fallthru
          _
      $region40: #{tpu_custom_call.1} parent=5 // pred_fallthru
        _
      %p378 = scmp.le.s32.totalorder 2, %s17
      // Predicated region
      $region49: #{tpu_custom_call.1} parent=5 // pred_check
        %p379 = pneg %p378
      $region50: #{tpu_custom_call.1} parent=5 // pred_check_branch
        %381 = sbr.rel (%p379) target = $region52
      $region51: #{tpu_custom_call.1} parent=5 // pred_region
        %s382 = ssub.s32 %s17, 2
        // Predicated region
        $region53: #{tpu_custom_call.1} parent=51 // pred_check
          %p383 = pneg %p156
        $region54: #{tpu_custom_call.1} parent=51 // pred_check_branch
          %385 = sbr.rel (%p383) target = $region56
        $region55: #{tpu_custom_call.1} parent=51 // pred_region
          %s386 = sand.u32 %s141, 1
          %s387 = scalar_lea.sflag [#allocation4], %s386
          %s388 = sand.u32 %s141, 1
          %s389 = smul.addr %s388, 4
          %s390 = scalar_lea.vmem [#allocation5], %s389
          %392 = dma.done %s387, 64
        $region56: #{tpu_custom_call.1} parent=51 // pred_fallthru
          _
      $region52: #{tpu_custom_call.1} parent=5 // pred_fallthru
        _
    $region6: #{tpu_custom_call.1} parent=1 // loop_footer
      %s21 = sadd.s32 1, %s17
    $region7: #{tpu_custom_call.1} parent=1 // loop_footer_branch
      %16 = sbr.rel target = $region3
    $region8: #{tpu_custom_call.1} parent=1 // loop_exit
      _
    %393 = vsyncpa [#allocation3], 1
    %s394 = scalar_lea.sflag [#allocation3], 1
    %395 = vsyncpa %s394, 1
    %396 = vsyncpa [#allocation4], 1
    %s397 = scalar_lea.sflag [#allocation4], 1
    %398 = vsyncpa %s397, 1

</llo_original>
